<compile_context>
chip_gen: v7x
topology: tpu7x:2x2x1
jax: 0.10.0
libtpu: 0.0.40
codegen_flags: <defaults>
</compile_context>

<pallas_src>
import functools

import jax
import jax.numpy as jnp
from jax.experimental import pallas as pl
from jax.experimental.pallas import tpu as pltpu


def _round_up(x: int, m: int) -> int:
    return ((x + m - 1) // m) * m


def _iou_kernel(pred_ref, gt_ref, out_ref, i_acc, u_acc, *, n_chunks):
    """Grid = (row_blocks, spatial_blocks); reduces spatial tiles per row block."""
    k = pl.program_id(1)

    @pl.when(k == 0)
    def _init():
        i_acc[...] = jnp.zeros_like(i_acc)
        u_acc[...] = jnp.zeros_like(u_acc)

    r_tile = i_acc.shape[0]
    # Fold the (r_tile, s_tile) tile down to 128 lanes with pure VPU adds over
    # aligned 128-lane chunks; no per-step cross-lane (XLU) reduction.
    i_part = jnp.zeros((r_tile, 128), jnp.float32)
    u_part = jnp.zeros((r_tile, 128), jnp.float32)
    for c in range(n_chunks):
        lo = c * 128
        pc = pred_ref[:, lo:lo + 128].astype(jnp.float32)
        gc = gt_ref[:, lo:lo + 128].astype(jnp.float32)
        pgc = pc * gc
        i_part = i_part + pgc
        u_part = u_part + (pc + gc - pgc)
    i_acc[...] += i_part
    u_acc[...] += u_part

    @pl.when(k == pl.num_programs(1) - 1)
    def _finalize():
        # Single 128 -> 1 cross-lane reduce per row block.
        inter = jnp.sum(i_acc[...], axis=-1, keepdims=True)                 # (r_tile, 1)
        union = jnp.sum(u_acc[...], axis=-1, keepdims=True) + jnp.float32(1e-6)
        out_ref[...] = (1.0 - inter / union).astype(out_ref.dtype)


def iou(pred: jax.Array, gt: jax.Array, reduce: bool = False) -> jax.Array:
    """Pallas IoU loss. pred/gt: [B, C, H, W]. Returns [B, C] (reduce=False)."""
    assert pred.shape == gt.shape
    B, C, H, W = pred.shape
    S = H * W
    R = B * C

    # Row tiling: sublane-dense flattened (B, C) rows, multiple of 8, capped so
    # the lane-dense accumulators stay register-friendly.
    r_tile = min(_round_up(max(R, 1), 8), 64)
    r_pad = _round_up(R, r_tile)

    # Spatial tiling: large lane-dense tiles (multiple of 128), sized against a
    # double-buffered DMA budget (2 inputs x 2 pipeline buffers) and capped so
    # the in-kernel chunk unroll stays modest.
    itemsize = jnp.dtype(pred.dtype).itemsize
    dma_budget = 24 * 1024 * 1024
    s_by_budget = (dma_budget // (2 * 2 * r_tile * itemsize)) // 128 * 128
    s_tile = max(128, min(4096, s_by_budget))
    s_tile = min(s_tile, _round_up(S, 128))
    s_pad = _round_up(S, s_tile)

    # Glue: [B, C, H, W] -> [R_pad, S_pad] with zero padding (exact for both sums).
    x = pred.reshape(R, S)
    y = gt.reshape(R, S)
    if r_pad != R or s_pad != S:
        x = jnp.pad(x, ((0, r_pad - R), (0, s_pad - S)))
        y = jnp.pad(y, ((0, r_pad - R), (0, s_pad - S)))

    grid = (r_pad // r_tile, s_pad // s_tile)
    n_chunks = s_tile // 128

    in_spec = pl.BlockSpec((r_tile, s_tile), lambda r, k: (r, k))
    out_spec = pl.BlockSpec((r_tile, 1), lambda r, k: (r, 0))

    out = pl.pallas_call(
        functools.partial(_iou_kernel, n_chunks=n_chunks),
        out_shape=jax.ShapeDtypeStruct((r_pad, 1), pred.dtype),
        grid_spec=pltpu.PrefetchScalarGridSpec(
            num_scalar_prefetch=0,
            grid=grid,
            in_specs=[in_spec, in_spec],
            out_specs=out_spec,
            scratch_shapes=[
                pltpu.VMEM((r_tile, 128), jnp.float32),  # intersect accumulator
                pltpu.VMEM((r_tile, 128), jnp.float32),  # union accumulator
            ],
        ),
        compiler_params=pltpu.CompilerParams(
            # rows are independent (megacore-parallel on v7x); spatial is the
            # accumulator-resident reduction axis.
            dimension_semantics=("parallel", "arbitrary"),
            vmem_limit_bytes=32 * 1024 * 1024,
        ),
        cost_estimate=pl.CostEstimate(
            flops=4 * r_pad * s_pad,
            transcendentals=0,
            bytes_accessed=2 * r_pad * s_pad * itemsize + r_pad * itemsize,
        ),
    )(x, y)

    out = out[:R, 0].reshape(B, C)
    if reduce:
        # The reference module never applies self.reduce in forward(); kept for parity.
        out = jnp.mean(out)
    return out


def _iou_ref(pred, gt):
    intersect = jnp.sum(pred * gt, axis=(2, 3))
    union = jnp.sum(pred + gt - pred * gt, axis=(2, 3)) + 1e-6
    return 1.0 - intersect / union


if __name__ == "__main__":
    key = jax.random.PRNGKey(0)
    k1, k2 = jax.random.split(key)
    B, C, H, W = 2, 4, 16, 16
    # Mask-like inputs in [0, 1], matching typical IoU usage.
    pred = jax.random.uniform(k1, (B, C, H, W), dtype=jnp.float32)
    gt = (jax.random.uniform(k2, (B, C, H, W), dtype=jnp.float32) > 0.5).astype(
        jnp.float32
    )

    out = jax.block_until_ready(iou(pred, gt))
    ref = _iou_ref(pred, gt)

    assert out.shape == (B, C), out.shape
    assert jnp.allclose(out, ref, atol=1e-5, rtol=1e-5), (out, ref)
    print("KERNEL_OK")
</pallas_src>

<mosaic_0001>
module attributes {stable_mosaic.version = 11 : i64} {
  func.func @_iou_kernel(%arg0: i32, %arg1: i32, %arg2: memref<8x256xf32, #tpu.memory_space<vmem>>, %arg3: memref<8x256xf32, #tpu.memory_space<vmem>>, %arg4: memref<8x1xf32, #tpu.memory_space<vmem>>, %arg5: memref<8x128xf32, #tpu.memory_space<vmem>>, %arg6: memref<8x128xf32, #tpu.memory_space<vmem>>) attributes {dimension_semantics = [#tpu.dimension_semantics<parallel>, #tpu.dimension_semantics<arbitrary>], iteration_bounds = array<i64: 1, 1>, scalar_prefetch = 0 : i64, scratch_operands = 2 : i64, tpu.core_type = #tpu.core_type<tc>, window_params = [{transform_indices = @transform_0, window_bounds = array<i64: 8, 256>}, {transform_indices = @transform_1, window_bounds = array<i64: 8, 256>}, {transform_indices = @transform_2, window_bounds = array<i64: 8, 1>}]} {
    %c0_i32 = arith.constant 0 : i32
    %0 = arith.cmpi eq, %arg1, %c0_i32 : i32
    %1 = arith.extui %0 : i1 to i32
    %c0_i32_0 = arith.constant 0 : i32
    %2 = arith.cmpi ne, %1, %c0_i32_0 : i32
    scf.if %2 {
      %cst_18 = arith.constant 0.000000e+00 : f32
      %28 = vector.broadcast %cst_18 : f32 to vector<8x128xf32>
      %c0_19 = arith.constant 0 : index
      %c0_20 = arith.constant 0 : index
      %29 = vector.load %arg5[%c0_19, %c0_20] : memref<8x128xf32, #tpu.memory_space<vmem>>, vector<8x128xf32>
      tpu.vector_store %arg5[%c0_19, %c0_20], %28 {strides = array<i32>} : memref<8x128xf32, #tpu.memory_space<vmem>>, vector<8x128xf32>,
      %cst_21 = arith.constant 0.000000e+00 : f32
      %30 = vector.broadcast %cst_21 : f32 to vector<8x128xf32>
      %c0_22 = arith.constant 0 : index
      %c0_23 = arith.constant 0 : index
      %31 = vector.load %arg6[%c0_22, %c0_23] : memref<8x128xf32, #tpu.memory_space<vmem>>, vector<8x128xf32>
      tpu.vector_store %arg6[%c0_22, %c0_23], %30 {strides = array<i32>} : memref<8x128xf32, #tpu.memory_space<vmem>>, vector<8x128xf32>,
    } else {
    }
    %cst = arith.constant 0.000000e+00 : f32
    %3 = vector.broadcast %cst : f32 to vector<8x128xf32>
    %cst_1 = arith.constant 0.000000e+00 : f32
    %4 = vector.broadcast %cst_1 : f32 to vector<8x128xf32>
    %c0 = arith.constant 0 : index
    %c0_2 = arith.constant 0 : index
    %5 = vector.load %arg2[%c0, %c0_2] : memref<8x256xf32, #tpu.memory_space<vmem>>, vector<8x128xf32>
    %c0_3 = arith.constant 0 : index
    %c0_4 = arith.constant 0 : index
    %6 = vector.load %arg3[%c0_3, %c0_4] : memref<8x256xf32, #tpu.memory_space<vmem>>, vector<8x128xf32>
    %7 = arith.mulf %5, %6 : vector<8x128xf32>
    %8 = arith.addf %3, %7 : vector<8x128xf32>
    %9 = arith.addf %5, %6 : vector<8x128xf32>
    %10 = arith.subf %9, %7 : vector<8x128xf32>
    %11 = arith.addf %4, %10 : vector<8x128xf32>
    %c0_5 = arith.constant 0 : index
    %c128 = arith.constant 128 : index
    %12 = vector.load %arg2[%c0_5, %c128] : memref<8x256xf32, #tpu.memory_space<vmem>>, vector<8x128xf32>
    %c0_6 = arith.constant 0 : index
    %c128_7 = arith.constant 128 : index
    %13 = vector.load %arg3[%c0_6, %c128_7] : memref<8x256xf32, #tpu.memory_space<vmem>>, vector<8x128xf32>
    %14 = arith.mulf %12, %13 : vector<8x128xf32>
    %15 = arith.addf %8, %14 : vector<8x128xf32>
    %16 = arith.addf %12, %13 : vector<8x128xf32>
    %17 = arith.subf %16, %14 : vector<8x128xf32>
    %18 = arith.addf %11, %17 : vector<8x128xf32>
    %c0_8 = arith.constant 0 : index
    %c0_9 = arith.constant 0 : index
    %19 = vector.load %arg5[%c0_8, %c0_9] : memref<8x128xf32, #tpu.memory_space<vmem>>, vector<8x128xf32>
    %20 = arith.addf %19, %15 : vector<8x128xf32>
    %c0_10 = arith.constant 0 : index
    %c0_11 = arith.constant 0 : index
    %21 = vector.load %arg5[%c0_10, %c0_11] : memref<8x128xf32, #tpu.memory_space<vmem>>, vector<8x128xf32>
    tpu.vector_store %arg5[%c0_10, %c0_11], %20 {strides = array<i32>} : memref<8x128xf32, #tpu.memory_space<vmem>>, vector<8x128xf32>,
    %c0_12 = arith.constant 0 : index
    %c0_13 = arith.constant 0 : index
    %22 = vector.load %arg6[%c0_12, %c0_13] : memref<8x128xf32, #tpu.memory_space<vmem>>, vector<8x128xf32>
    %23 = arith.addf %22, %18 : vector<8x128xf32>
    %c0_14 = arith.constant 0 : index
    %c0_15 = arith.constant 0 : index
    %24 = vector.load %arg6[%c0_14, %c0_15] : memref<8x128xf32, #tpu.memory_space<vmem>>, vector<8x128xf32>
    tpu.vector_store %arg6[%c0_14, %c0_15], %23 {strides = array<i32>} : memref<8x128xf32, #tpu.memory_space<vmem>>, vector<8x128xf32>,
    %c0_i32_16 = arith.constant 0 : i32
    %25 = arith.cmpi eq, %arg1, %c0_i32_16 : i32
    %26 = arith.extui %25 : i1 to i32
    %c0_i32_17 = arith.constant 0 : i32
    %27 = arith.cmpi ne, %26, %c0_i32_17 : i32
    scf.if %27 {
      %c0_18 = arith.constant 0 : index
      %c0_19 = arith.constant 0 : index
      %28 = vector.load %arg5[%c0_18, %c0_19] : memref<8x128xf32, #tpu.memory_space<vmem>>, vector<8x128xf32>
      %cst_20 = arith.constant dense<0.000000e+00> : vector<8xf32>
      %29 = vector.multi_reduction <add>, %28, %cst_20 [1] : vector<8x128xf32> to vector<8xf32>
      %30 = vector.shape_cast %29 : vector<8xf32> to vector<8x1xf32>
      %c0_21 = arith.constant 0 : index
      %c0_22 = arith.constant 0 : index
      %31 = vector.load %arg6[%c0_21, %c0_22] : memref<8x128xf32, #tpu.memory_space<vmem>>, vector<8x128xf32>
      %cst_23 = arith.constant dense<0.000000e+00> : vector<8xf32>
      %32 = vector.multi_reduction <add>, %31, %cst_23 [1] : vector<8x128xf32> to vector<8xf32>
      %33 = vector.shape_cast %32 : vector<8xf32> to vector<8x1xf32>
      %cst_24 = arith.constant 9.99999997E-7 : f32
      %34 = vector.broadcast %cst_24 : f32 to vector<8x1xf32>
      %35 = arith.addf %33, %34 : vector<8x1xf32>
      %36 = arith.divf %30, %35 : vector<8x1xf32>
      %cst_25 = arith.constant 1.000000e+00 : f32
      %37 = vector.broadcast %cst_25 : f32 to vector<8x1xf32>
      %38 = arith.subf %37, %36 : vector<8x1xf32>
      %c0_26 = arith.constant 0 : index
      %c0_27 = arith.constant 0 : index
      %39 = vector.load %arg4[%c0_26, %c0_27] : memref<8x1xf32, #tpu.memory_space<vmem>>, vector<8x1xf32>
      tpu.vector_store %arg4[%c0_26, %c0_27], %38 {strides = array<i32>} : memref<8x1xf32, #tpu.memory_space<vmem>>, vector<8x1xf32>,
    } else {
    }
    return
  }
  func.func @transform_0(%arg0: i32, %arg1: i32) -> (i32, i32) {
    %c0_i32 = arith.constant 0 : i32
    return %arg0, %arg1 : i32, i32
  }
  func.func @transform_1(%arg0: i32, %arg1: i32) -> (i32, i32) {
    %c0_i32 = arith.constant 0 : i32
    return %arg0, %arg1 : i32, i32
  }
  func.func @transform_2(%arg0: i32, %arg1: i32) -> (i32, i32) {
    %c0_i32 = arith.constant 0 : i32
    %c0_i32_0 = arith.constant 0 : i32
    return %arg0, %c0_i32 : i32, i32
  }
}

</mosaic_0001>

<llo_original>
// kernel: tpu_custom_call.1
$region0: #{tpu_custom_call.1}
  #allocation0 [shape = 'u32[]', space=smem, size = 0x4, offset = 0x4, fixed_abs, tag = 'smem constant byte address 0x4 - core index']
  #allocation1 [shape = 'u32[144,128]{1,0:T(1,128)}', space=vmem, size = 0x12000, scoped, tag = 'internal scratch']
  #allocation2 [shape = 'f32[8,128]{1,0:T(8,128)}', space=vmem, size = 0x1000, scoped, tag = 'scratch operand']
  #allocation3 [shape = 'f32[8,128]{1,0:T(8,128)}', space=vmem, size = 0x1000, scoped, tag = 'scratch operand']
  %s0 = inlined_call_operand.hbm [shape: f32[8,256], index: 0, kind: input, shape index: {}]
  %s1 = inlined_call_operand.hbm [shape: f32[8,256], index: 1, kind: input, shape index: {}]
  %s2 = inlined_call_operand.vmem [shape: f32[8,1], index: 2, kind: output, shape index: {}]
  %s3 = sld [smem:[#allocation0]]
  $region34: #{tpu_custom_call.1} parent=0
    _
  %s5 = ssub.s32 1, %s3
  %s6 = scalar_select 0, %s5, %s3
  $region1: #{tpu_custom_call.1} parent=0
    #allocation4 [shape = 'u8[8192]{0}', space=vmem, size = 0x2000, scoped, tag = 'input window, operand 0, single buffered']
    #allocation5 [shape = 's32[1]{0}', space=sflag, size = 0x4, scoped, tag = 'scoped memory for tpu_custom_call.1']
    #allocation6 [shape = 'u8[8192]{0}', space=vmem, size = 0x2000, scoped, tag = 'input window, operand 1, single buffered']
    #allocation7 [shape = 's32[1]{0}', space=sflag, size = 0x4, scoped, tag = 'scoped memory for tpu_custom_call.1']
    %7 = vsyncpa [#allocation5], 0
    %8 = vsyncpa [#allocation7], 0
    // Predicated region
    $region2: #{tpu_custom_call.1} parent=1 // pred_check
      _
    $region3: #{tpu_custom_call.1} parent=1 // pred_check_branch
      %10 = sbr.rel (0) target = $region5
    $region4: #{tpu_custom_call.1} parent=1 // pred_region
      %s12 = ssub.s32 256, 256
      %13 = vsyncadd [#allocation5], %s12
      %s15 = sshll.u32 [#allocation4], 4
      %s16 = int_to_ptr.vmem [resolvable:$true] %s15
      %18 = dma.hbm_to_vmem [thread:$0]  %s0, 256, %s16, [#allocation5]
    $region5: #{tpu_custom_call.1} parent=1 // pred_fallthru
      _
    // Predicated region
    $region6: #{tpu_custom_call.1} parent=1 // pred_check
      _
    $region7: #{tpu_custom_call.1} parent=1 // pred_check_branch
      %20 = sbr.rel (0) target = $region9
    $region8: #{tpu_custom_call.1} parent=1 // pred_region
      %s22 = ssub.s32 256, 256
      %23 = vsyncadd [#allocation7], %s22
      %s25 = sshll.u32 [#allocation6], 4
      %s26 = int_to_ptr.vmem [resolvable:$true] %s25
      %28 = dma.hbm_to_vmem [thread:$0]  %s1, 256, %s26, [#allocation7]
    $region9: #{tpu_custom_call.1} parent=1 // pred_fallthru
      _
    // Predicated region
    $region10: #{tpu_custom_call.1} parent=1 // pred_check
      _
    $region11: #{tpu_custom_call.1} parent=1 // pred_check_branch
      %30 = sbr.rel (0) target = $region13
    $region12: #{tpu_custom_call.1} parent=1 // pred_region
      %31 = dma.done [#allocation5], 256
    $region13: #{tpu_custom_call.1} parent=1 // pred_fallthru
      _
    // Predicated region
    $region14: #{tpu_custom_call.1} parent=1 // pred_check
      _
    $region15: #{tpu_custom_call.1} parent=1 // pred_check_branch
      %33 = sbr.rel (0) target = $region17
    $region16: #{tpu_custom_call.1} parent=1 // pred_region
      %34 = dma.done [#allocation7], 256
    $region17: #{tpu_custom_call.1} parent=1 // pred_fallthru
      _
    %p35 = scmp.eq.s32.totalorder 0, 0
    // Predicated region
    $region18: #{tpu_custom_call.1} parent=1 // pred_check
      %p36 = pneg %p35
    $region19: #{tpu_custom_call.1} parent=1 // pred_check_branch
      %38 = sbr.rel (%p36) target = $region21
    $region20: #{tpu_custom_call.1} parent=1 // pred_region
      %39 = vst [vmem:[#allocation2] sm:$0xff] 0.0
      %40 = vst [vmem:[#allocation3] sm:$0xff] 0.0
    $region21: #{tpu_custom_call.1} parent=1 // pred_fallthru
      _
    %v41 = vld [vmem:[#allocation4] sm:$0xff]
    %v42 = vld [vmem:[#allocation6] sm:$0xff]
    %v43 = vmul.f32 %v41, %v42
    %v44 = vadd.f32 %v43, 0.0
    %v45 = vadd.f32 %v41, %v42
    %v46 = vsub.f32 %v45, %v43
    %v47 = vadd.f32 %v46, 0.0
    %v48 = vld [vmem:[#allocation4 + $0x8] sm:$0xff]
    %v49 = vld [vmem:[#allocation6 + $0x8] sm:$0xff]
    %v50 = vmul.f32 %v48, %v49
    %v51 = vadd.f32 %v44, %v50
    %v52 = vadd.f32 %v48, %v49
    %v53 = vsub.f32 %v52, %v50
    %v54 = vadd.f32 %v47, %v53
    %v55 = vld [vmem:[#allocation2] sm:$0xff]
    %v56 = vadd.f32 %v55, %v51
    %57 = vst [vmem:[#allocation2] sm:$0xff] %v56
    %v58 = vld [vmem:[#allocation3] sm:$0xff]
    %v59 = vadd.f32 %v58, %v54
    %60 = vst [vmem:[#allocation3] sm:$0xff] %v59
    // Predicated region
    $region22: #{tpu_custom_call.1} parent=1 // pred_check
      %p61 = pneg %p35
    $region23: #{tpu_custom_call.1} parent=1 // pred_check_branch
      %63 = sbr.rel (%p61) target = $region25
    $region24: #{tpu_custom_call.1} parent=1 // pred_region
      %v64 = vld [vmem:[#allocation2] sm:$0xff]
      %65 = vadd.xlane.f32.xlu0 %v64
      %v66 = vpop.xlane.xlu0 %65
      %v67 = vld [vmem:[#allocation3] sm:$0xff]
      %68 = vadd.xlane.f32.xlu0 %v67
      %v69 = vpop.xlane.xlu0 %68
      %v70 = vadd.f32 %v69, 1e-06
      %v71 = vrcp.pop %v70
      %v72 = vmul.f32 %v66, %v71
      %v73 = vsub.f32 1.0, %v72
      %vm74 = vcmask 7168
      %75 = vst.msk [vmem:[%s2] sm:$0xff] %vm74, %v73
    $region25: #{tpu_custom_call.1} parent=1 // pred_fallthru
      _
    // Predicated region
    $region26: #{tpu_custom_call.1} parent=1 // pred_check
      _
    $region27: #{tpu_custom_call.1} parent=1 // pred_check_branch
      %77 = sbr.rel (0) target = $region29
    $region28: #{tpu_custom_call.1} parent=1 // pred_region
      _
    $region29: #{tpu_custom_call.1} parent=1 // pred_fallthru
      _
    // Predicated region
    $region30: #{tpu_custom_call.1} parent=1 // pred_check
      _
    $region31: #{tpu_custom_call.1} parent=1 // pred_check_branch
      %79 = sbr.rel (0) target = $region33
    $region32: #{tpu_custom_call.1} parent=1 // pred_region
      _
    $region33: #{tpu_custom_call.1} parent=1 // pred_fallthru
      _
    %80 = vsyncpa [#allocation5], 1
    %81 = vsyncpa [#allocation7], 1

</llo_original>
